<compile_context>
chip_gen: v7x
topology: tpu7x:2x2x1
jax: 0.10.0
libtpu: 0.0.40
codegen_flags: <defaults>
</compile_context>

<pallas_src>
import functools

import jax
import jax.numpy as jnp
from jax.experimental import pallas as pl
from jax.experimental.pallas import tpu as pltpu

INPUT_SIZE = 10
HIDDEN_SIZE = 20
OUTPUT_SIZE = 5

LANE = 128          # lane-dense padded feature width
NEG_BIG = -1e30     # masks padded logit lanes out of the softmax


# ---------------------------------------------------------------------------
# Kernel
# ---------------------------------------------------------------------------
def _markov_rollout_kernel(x_ref, h0_ref, wc_ref, bh_ref, wo_ref, bo_ref,
                           probs_ref, hfin_ref, comb_ref):
    """Fused multi-step Markov/RNN cell.

    Grid = (batch_blocks, T).  Lane layout of the 128-wide "combined" slab:
        cols [0, HIDDEN)             : hidden state h
        cols [HIDDEN, HIDDEN+INPUT)  : current input x_t
        cols [HIDDEN+INPUT, 128)     : zero padding
    comb_ref (VMEM scratch) carries the hidden state across time steps.
    """
    t = pl.program_id(1)

    @pl.when(t == 0)
    def _():
        # Fresh recurrence for this batch block; h0 slab is zero outside the
        # hidden columns (including the x slot).
        comb_ref[...] = h0_ref[...]

    # cat((x, h), 1): x_t's lane slot is zero in the carried slab, so a plain
    # elementwise add injects it -- no masked stores, no lane shifts.
    combined = comb_ref[...] + x_ref[0]

    # hidden = tanh(cat(x, h) @ W_hidden.T + b_hidden) as ONE fused matmul
    # against the pre-packed (128, 128) weight (padded rows/cols are zero).
    pre_h = jnp.dot(combined, wc_ref[...],
                    preferred_element_type=jnp.float32) + bh_ref[...]
    h_full = jnp.tanh(pre_h)            # padded lanes are exactly 0
    comb_ref[...] = h_full              # carry h; x slot is refilled next step

    # output = softmax(hidden @ W_out.T + b_out).  Padded logit lanes carry
    # NEG_BIG (via the padded bias) so they vanish from the softmax sum.
    logits = jnp.dot(h_full, wo_ref[...],
                     preferred_element_type=jnp.float32) + bo_ref[...]
    m = jnp.max(logits, axis=-1, keepdims=True)
    e = jnp.exp(logits - m)
    denom = jnp.sum(e, axis=-1, keepdims=True)
    probs_ref[0] = e * pl.reciprocal(denom, approx=True)

    # Final hidden: constant block per batch block -> written back at the end.
    hfin_ref[...] = h_full


# ---------------------------------------------------------------------------
# One-time parameter repack (PyTorch layout -> kernel-friendly lane-dense)
# ---------------------------------------------------------------------------
def prepare_params(w_hidden, b_hidden, w_output, b_output):
    """Call once at init time; the forward path gets pre-packed weights."""
    hid, fan = w_hidden.shape
    inp = fan - hid
    out = w_output.shape[0]
    assert hid + inp <= LANE and out <= LANE and hid <= LANE

    wx = w_hidden[:, :inp]                       # (hid, in)
    wh = w_hidden[:, inp:]                       # (hid, hid)
    # Combined-slab feature order is [h | x]; transpose to (K, N) row-major.
    w_comb = jnp.concatenate([wh, wx], axis=1).T           # (hid+in, hid)
    wc_pad = jnp.zeros((LANE, LANE), jnp.float32).at[:hid + inp, :hid].set(w_comb)
    bh_pad = jnp.zeros((1, LANE), jnp.float32).at[0, :hid].set(b_hidden)

    wo_pad = jnp.zeros((LANE, LANE), jnp.float32).at[:hid, :out].set(w_output.T)
    bo_pad = jnp.full((1, LANE), NEG_BIG, jnp.float32).at[0, :out].set(b_output)
    return wc_pad, bh_pad, wo_pad, bo_pad


# ---------------------------------------------------------------------------
# Wrappers
# ---------------------------------------------------------------------------
@functools.partial(jax.jit, static_argnames=("b_block",))
def markov_model_rollout(xs, h0, wc_pad, bh_pad, wo_pad, bo_pad, *, b_block=None):
    """Apply the cell over a whole sequence in a single pallas_call.

    xs: (T, B, input_size), h0: (B, hidden_size)
    returns: (probs (T, B, output_size), final hidden (B, hidden_size))
    """
    T, B, inp = xs.shape
    hid = h0.shape[1]
    if b_block is None:
        b_block = B
    assert B % b_block == 0 and (b_block == B or b_block % 8 == 0)

    # Lane-dense slabs: h lives at cols [0, hid), x at cols [hid, hid+inp).
    xs_slab = jnp.zeros((T, B, LANE), jnp.float32).at[:, :, hid:hid + inp].set(xs)
    h0_slab = jnp.zeros((B, LANE), jnp.float32).at[:, :hid].set(h0)

    grid = (B // b_block, T)
    const2 = lambda b, t: (0, 0)

    probs_slab, hfin_slab = pl.pallas_call(
        _markov_rollout_kernel,
        out_shape=(
            jax.ShapeDtypeStruct((T, B, LANE), jnp.float32),
            jax.ShapeDtypeStruct((B, LANE), jnp.float32),
        ),
        grid_spec=pltpu.PrefetchScalarGridSpec(
            num_scalar_prefetch=0,
            grid=grid,
            in_specs=[
                pl.BlockSpec((1, b_block, LANE), lambda b, t: (t, b, 0)),  # xs
                pl.BlockSpec((b_block, LANE), lambda b, t: (b, 0)),        # h0
                pl.BlockSpec((LANE, LANE), const2),                        # W_comb (resident)
                pl.BlockSpec((1, LANE), const2),                           # b_hidden
                pl.BlockSpec((LANE, LANE), const2),                        # W_out (resident)
                pl.BlockSpec((1, LANE), const2),                           # b_out
            ],
            out_specs=(
                pl.BlockSpec((1, b_block, LANE), lambda b, t: (t, b, 0)),  # probs/step
                pl.BlockSpec((b_block, LANE), lambda b, t: (b, 0)),        # final h
            ),
            scratch_shapes=[pltpu.VMEM((b_block, LANE), jnp.float32)],     # carried h
        ),
        compiler_params=pltpu.CompilerParams(
            dimension_semantics=("parallel", "arbitrary")),
    )(xs_slab, h0_slab, wc_pad, bh_pad, wo_pad, bo_pad)

    # One slice per call (amortized over the whole sequence).
    probs = probs_slab[:, :, :OUTPUT_SIZE]
    h_final = hfin_slab[:, :HIDDEN_SIZE]
    return probs, h_final


def markov_model_forward(x, h, wc_pad, bh_pad, wo_pad, bo_pad):
    """Exact equivalent of MarkovModel.forward(input, hidden): one cell step."""
    probs_seq, h_new = markov_model_rollout(x[None], h, wc_pad, bh_pad,
                                            wo_pad, bo_pad)
    return probs_seq[0], h_new


# ---------------------------------------------------------------------------
# Init + reference
# ---------------------------------------------------------------------------
def init_params(key, input_size, hidden_size, output_size):
    # Deterministic init mimicking PyTorch nn.Linear default U[-1/sqrt(fan_in), +].
    k1, k2, k3, k4 = jax.random.split(key, 4)
    fan_h = input_size + hidden_size
    bound_h = 1.0 / jnp.sqrt(fan_h)
    bound_o = 1.0 / jnp.sqrt(hidden_size)
    w_hidden = jax.random.uniform(k1, (hidden_size, fan_h), jnp.float32,
                                  -bound_h, bound_h)
    b_hidden = jax.random.uniform(k2, (hidden_size,), jnp.float32,
                                  -bound_h, bound_h)
    w_output = jax.random.uniform(k3, (output_size, hidden_size), jnp.float32,
                                  -bound_o, bound_o)
    b_output = jax.random.uniform(k4, (output_size,), jnp.float32,
                                  -bound_o, bound_o)
    return w_hidden, b_hidden, w_output, b_output


def reference_rollout(xs, h0, w_hidden, b_hidden, w_output, b_output):
    """Pure-JAX reference: the PyTorch module's forward scanned over time."""
    def step(h, x):
        combined = jnp.concatenate([x, h], axis=1)
        h_new = jnp.tanh(combined @ w_hidden.T + b_hidden)
        logits = h_new @ w_output.T + b_output
        return h_new, jax.nn.softmax(logits, axis=1)
    h_final, probs = jax.lax.scan(step, h0, xs)
    return probs, h_final


# ---------------------------------------------------------------------------
# Demo / self-check
# ---------------------------------------------------------------------------
if __name__ == "__main__":
    key = jax.random.PRNGKey(0)
    kx, kp = jax.random.split(key)

    B, T = 8, 16   # small demo shapes; B fills the 8 vreg sublanes
    xs = jax.random.normal(kx, (T, B, INPUT_SIZE), jnp.float32)
    h0 = jnp.zeros((B, HIDDEN_SIZE), jnp.float32)   # init_hidden(), batched

    w_hidden, b_hidden, w_output, b_output = init_params(
        kp, INPUT_SIZE, HIDDEN_SIZE, OUTPUT_SIZE)
    packed = prepare_params(w_hidden, b_hidden, w_output, b_output)  # once

    # Fused multi-step rollout (one pallas_call for all T steps).
    probs_seq, h_final = markov_model_rollout(xs, h0, *packed)
    jax.block_until_ready((probs_seq, h_final))

    probs_ref, h_ref = reference_rollout(xs, h0, w_hidden, b_hidden,
                                         w_output, b_output)

    assert probs_seq.shape == (T, B, OUTPUT_SIZE)
    assert h_final.shape == (B, HIDDEN_SIZE)
    assert jnp.allclose(h_final, h_ref, atol=1e-4, rtol=1e-4)
    # approx=True reciprocal in the softmax -> looser tolerance on probs.
    assert jnp.allclose(probs_seq, probs_ref, atol=5e-3, rtol=5e-3)
    assert jnp.allclose(jnp.sum(probs_seq, axis=-1), 1.0, atol=5e-3)

    # Single-step forward (exact module semantics): forward(x, h) -> (probs, h)
    x1 = xs[0]
    probs1, h1 = markov_model_forward(x1, h0, *packed)
    jax.block_until_ready((probs1, h1))
    combined = jnp.concatenate([x1, h0], axis=1)
    h1_ref = jnp.tanh(combined @ w_hidden.T + b_hidden)
    probs1_ref = jax.nn.softmax(h1_ref @ w_output.T + b_output, axis=1)
    assert probs1.shape == (B, OUTPUT_SIZE) and h1.shape == (B, HIDDEN_SIZE)
    assert jnp.allclose(h1, h1_ref, atol=1e-4, rtol=1e-4)
    assert jnp.allclose(probs1, probs1_ref, atol=5e-3, rtol=5e-3)

    print("KERNEL_OK")
</pallas_src>

<mosaic_0001>
module attributes {stable_mosaic.version = 11 : i64} {
  func.func @_markov_rollout_kernel(%arg0: i32, %arg1: i32, %arg2: memref<1x8x128xf32, #tpu.memory_space<vmem>>, %arg3: memref<8x128xf32, #tpu.memory_space<vmem>>, %arg4: memref<128x128xf32, #tpu.memory_space<vmem>>, %arg5: memref<1x128xf32, #tpu.memory_space<vmem>>, %arg6: memref<128x128xf32, #tpu.memory_space<vmem>>, %arg7: memref<1x128xf32, #tpu.memory_space<vmem>>, %arg8: memref<1x8x128xf32, #tpu.memory_space<vmem>>, %arg9: memref<8x128xf32, #tpu.memory_space<vmem>>, %arg10: memref<8x128xf32, #tpu.memory_space<vmem>>) attributes {dimension_semantics = [#tpu.dimension_semantics<parallel>, #tpu.dimension_semantics<arbitrary>], iteration_bounds = array<i64: 1, 16>, scalar_prefetch = 0 : i64, scratch_operands = 1 : i64, tpu.core_type = #tpu.core_type<tc>, window_params = [{transform_indices = @transform_0, window_bounds = array<i64: 1, 8, 128>}, {transform_indices = @transform_1, window_bounds = array<i64: 8, 128>}, {pipeline_mode = #tpu.pipeline_mode<synchronous>, transform_indices = @transform_2, window_bounds = array<i64: 128, 128>}, {pipeline_mode = #tpu.pipeline_mode<synchronous>, transform_indices = @transform_3, window_bounds = array<i64: 1, 128>}, {pipeline_mode = #tpu.pipeline_mode<synchronous>, transform_indices = @transform_4, window_bounds = array<i64: 128, 128>}, {pipeline_mode = #tpu.pipeline_mode<synchronous>, transform_indices = @transform_5, window_bounds = array<i64: 1, 128>}, {transform_indices = @transform_6, window_bounds = array<i64: 1, 8, 128>}, {transform_indices = @transform_7, window_bounds = array<i64: 8, 128>}]} {
    %c0_i32 = arith.constant 0 : i32
    %0 = arith.cmpi eq, %arg1, %c0_i32 : i32
    %1 = arith.extui %0 : i1 to i32
    %c0_i32_0 = arith.constant 0 : i32
    %2 = arith.cmpi ne, %1, %c0_i32_0 : i32
    scf.if %2 {
      %c0_23 = arith.constant 0 : index
      %c0_24 = arith.constant 0 : index
      %33 = vector.load %arg3[%c0_23, %c0_24] : memref<8x128xf32, #tpu.memory_space<vmem>>, vector<8x128xf32>
      %c0_25 = arith.constant 0 : index
      %c0_26 = arith.constant 0 : index
      %34 = vector.load %arg10[%c0_25, %c0_26] : memref<8x128xf32, #tpu.memory_space<vmem>>, vector<8x128xf32>
      tpu.vector_store %arg10[%c0_25, %c0_26], %33 {strides = array<i32>} : memref<8x128xf32, #tpu.memory_space<vmem>>, vector<8x128xf32>,
    } else {
    }
    %c0 = arith.constant 0 : index
    %c0_1 = arith.constant 0 : index
    %3 = vector.load %arg10[%c0, %c0_1] : memref<8x128xf32, #tpu.memory_space<vmem>>, vector<8x128xf32>
    %c0_2 = arith.constant 0 : index
    %c0_3 = arith.constant 0 : index
    %c0_4 = arith.constant 0 : index
    %4 = vector.load %arg2[%c0_2, %c0_3, %c0_4] : memref<1x8x128xf32, #tpu.memory_space<vmem>>, vector<1x8x128xf32>
    %5 = vector.shape_cast %4 : vector<1x8x128xf32> to vector<8x128xf32>
    %6 = arith.addf %3, %5 : vector<8x128xf32>
    %c0_5 = arith.constant 0 : index
    %c0_6 = arith.constant 0 : index
    %7 = vector.load %arg4[%c0_5, %c0_6] : memref<128x128xf32, #tpu.memory_space<vmem>>, vector<128x128xf32>
    %cst = arith.constant dense<0.000000e+00> : vector<8x128xf32>
    %8 = tpu.matmul %6, %7, %cst {dimension_numbers = #tpu.dot_dimension_numbers<[1], [0], [0], [1], [0, 0, 1, 1], [], []>} : vector<8x128xf32>, vector<128x128xf32>, vector<8x128xf32> -> vector<8x128xf32>
    %c0_7 = arith.constant 0 : index
    %c0_8 = arith.constant 0 : index
    %9 = vector.load %arg5[%c0_7, %c0_8] : memref<1x128xf32, #tpu.memory_space<vmem>>, vector<1x128xf32>
    %10 = vector.broadcast %9 : vector<1x128xf32> to vector<8x128xf32>
    %11 = arith.addf %8, %10 : vector<8x128xf32>
    %12 = math.tanh %11 : vector<8x128xf32>
    %c0_9 = arith.constant 0 : index
    %c0_10 = arith.constant 0 : index
    %13 = vector.load %arg10[%c0_9, %c0_10] : memref<8x128xf32, #tpu.memory_space<vmem>>, vector<8x128xf32>
    tpu.vector_store %arg10[%c0_9, %c0_10], %12 {strides = array<i32>} : memref<8x128xf32, #tpu.memory_space<vmem>>, vector<8x128xf32>,
    %c0_11 = arith.constant 0 : index
    %c0_12 = arith.constant 0 : index
    %14 = vector.load %arg6[%c0_11, %c0_12] : memref<128x128xf32, #tpu.memory_space<vmem>>, vector<128x128xf32>
    %cst_13 = arith.constant dense<0.000000e+00> : vector<8x128xf32>
    %15 = tpu.matmul %12, %14, %cst_13 {dimension_numbers = #tpu.dot_dimension_numbers<[1], [0], [0], [1], [0, 0, 1, 1], [], []>} : vector<8x128xf32>, vector<128x128xf32>, vector<8x128xf32> -> vector<8x128xf32>
    %c0_14 = arith.constant 0 : index
    %c0_15 = arith.constant 0 : index
    %16 = vector.load %arg7[%c0_14, %c0_15] : memref<1x128xf32, #tpu.memory_space<vmem>>, vector<1x128xf32>
    %17 = vector.broadcast %16 : vector<1x128xf32> to vector<8x128xf32>
    %18 = arith.addf %15, %17 : vector<8x128xf32>
    %cst_16 = arith.constant dense<0xFF800000> : vector<8xf32>
    %19 = vector.multi_reduction <maximumf>, %18, %cst_16 [1] : vector<8x128xf32> to vector<8xf32>
    %20 = vector.shape_cast %19 : vector<8xf32> to vector<8x1xf32>
    %21 = vector.broadcast %20 : vector<8x1xf32> to vector<8x128xf32>
    %22 = arith.subf %18, %21 : vector<8x128xf32>
    %23 = math.exp %22 : vector<8x128xf32>
    %cst_17 = arith.constant dense<0.000000e+00> : vector<8xf32>
    %24 = vector.multi_reduction <add>, %23, %cst_17 [1] : vector<8x128xf32> to vector<8xf32>
    %25 = vector.shape_cast %24 : vector<8xf32> to vector<8x1xf32>
    %26 = tpu.reciprocal %25 {approx = true} : vector<8x1xf32> -> vector<8x1xf32>
    %27 = vector.broadcast %26 : vector<8x1xf32> to vector<8x128xf32>
    %28 = arith.mulf %23, %27 : vector<8x128xf32>
    %c0_18 = arith.constant 0 : index
    %c0_19 = arith.constant 0 : index
    %c0_20 = arith.constant 0 : index
    %29 = vector.load %arg8[%c0_18, %c0_19, %c0_20] : memref<1x8x128xf32, #tpu.memory_space<vmem>>, vector<1x8x128xf32>
    %30 = vector.shape_cast %29 : vector<1x8x128xf32> to vector<8x128xf32>
    %31 = vector.shape_cast %28 : vector<8x128xf32> to vector<1x8x128xf32>
    tpu.vector_store %arg8[%c0_18, %c0_19, %c0_20], %31 {strides = array<i32>} : memref<1x8x128xf32, #tpu.memory_space<vmem>>, vector<1x8x128xf32>,
    %c0_21 = arith.constant 0 : index
    %c0_22 = arith.constant 0 : index
    %32 = vector.load %arg9[%c0_21, %c0_22] : memref<8x128xf32, #tpu.memory_space<vmem>>, vector<8x128xf32>
    tpu.vector_store %arg9[%c0_21, %c0_22], %12 {strides = array<i32>} : memref<8x128xf32, #tpu.memory_space<vmem>>, vector<8x128xf32>,
    return
  }
  func.func @transform_0(%arg0: i32, %arg1: i32) -> (i32, i32, i32) {
    %c0_i32 = arith.constant 0 : i32
    %c0_i32_0 = arith.constant 0 : i32
    return %arg1, %arg0, %c0_i32 : i32, i32, i32
  }
  func.func @transform_1(%arg0: i32, %arg1: i32) -> (i32, i32) {
    %c0_i32 = arith.constant 0 : i32
    %c0_i32_0 = arith.constant 0 : i32
    return %arg0, %c0_i32 : i32, i32
  }
  func.func @transform_2(%arg0: i32, %arg1: i32) -> (i32, i32) {
    %c0_i32 = arith.constant 0 : i32
    %c0_i32_0 = arith.constant 0 : i32
    %c0_i32_1 = arith.constant 0 : i32
    return %c0_i32, %c0_i32_0 : i32, i32
  }
  func.func @transform_3(%arg0: i32, %arg1: i32) -> (i32, i32) {
    %c0_i32 = arith.constant 0 : i32
    %c0_i32_0 = arith.constant 0 : i32
    %c0_i32_1 = arith.constant 0 : i32
    return %c0_i32, %c0_i32_0 : i32, i32
  }
  func.func @transform_4(%arg0: i32, %arg1: i32) -> (i32, i32) {
    %c0_i32 = arith.constant 0 : i32
    %c0_i32_0 = arith.constant 0 : i32
    %c0_i32_1 = arith.constant 0 : i32
    return %c0_i32, %c0_i32_0 : i32, i32
  }
  func.func @transform_5(%arg0: i32, %arg1: i32) -> (i32, i32) {
    %c0_i32 = arith.constant 0 : i32
    %c0_i32_0 = arith.constant 0 : i32
    %c0_i32_1 = arith.constant 0 : i32
    return %c0_i32, %c0_i32_0 : i32, i32
  }
  func.func @transform_6(%arg0: i32, %arg1: i32) -> (i32, i32, i32) {
    %c0_i32 = arith.constant 0 : i32
    %c0_i32_0 = arith.constant 0 : i32
    return %arg1, %arg0, %c0_i32 : i32, i32, i32
  }
  func.func @transform_7(%arg0: i32, %arg1: i32) -> (i32, i32) {
    %c0_i32 = arith.constant 0 : i32
    %c0_i32_0 = arith.constant 0 : i32
    return %arg0, %c0_i32 : i32, i32
  }
}

</mosaic_0001>

<llo_original>
// kernel: markov_model_rollout.1
$region0: #{markov_model_rollout.1}
  #allocation0 [shape = 'u32[]', space=smem, size = 0x4, offset = 0x4, fixed_abs, tag = 'smem constant byte address 0x4 - core index']
  #allocation1 [shape = 'u32[144,128]{1,0:T(1,128)}', space=vmem, size = 0x12000, scoped, tag = 'internal scratch']
  #allocation2 [shape = 'f32[8,128]{1,0:T(8,128)}', space=vmem, size = 0x1000, scoped, tag = 'scratch operand']
  %s0 = inlined_call_operand.vmem [shape: f32[16,8,128], index: 0, kind: input, shape index: {}]
  %s1 = inlined_call_operand.vmem [shape: f32[8,128], index: 1, kind: input, shape index: {}]
  %s2 = inlined_call_operand.vmem [shape: f32[128,128], index: 2, kind: input, shape index: {}]
  %s3 = inlined_call_operand.vmem [shape: f32[1,128], index: 3, kind: input, shape index: {}]
  %s4 = inlined_call_operand.vmem [shape: f32[128,128], index: 4, kind: input, shape index: {}]
  %s5 = inlined_call_operand.vmem [shape: f32[1,128], index: 5, kind: input, shape index: {}]
  %s6 = inlined_call_operand.vmem [shape: f32[16,8,128], index: 6, kind: output, shape index: {0}]
  %s7 = inlined_call_operand.hbm [shape: f32[8,128], index: 7, kind: output, shape index: {1}]
  %8 = xla_tuple %s6, %s7
  %s9 = sld [smem:[#allocation0]]
  $region69: #{markov_model_rollout.1} parent=0
    _
  %s11 = ssub.s32 1, %s9
  %s12 = scalar_select 0, %s11, %s9
  $region1: #{markov_model_rollout.1} parent=0
    #allocation3 [shape = 'u8[4096]{0}', space=vmem, size = 0x1000, scoped, tag = 'output window, operand 1, single buffered']
    #allocation4 [shape = 's32[2]{0}', space=sflag, size = 0x8, scoped, tag = 'scoped memory for markov_model_rollout.1']
    %13 = vsyncpa [#allocation4], 0
    loop: start=0, step=1, limit=18
    $region2: #{markov_model_rollout.1} parent=1 // loop_pre_header
      _
    $region3: #{markov_model_rollout.1} parent=1 // loop_header
      %s15 = sphi 0, %s19
      %p16 = scmp.ge.s32.totalorder %s15, 18
      %s22 = sphi 0, %s34
      %s23 = sphi 0, %s30
      %s24 = sphi 0, %s22
      %s25 = sphi 0, %s23
      %s26 = sphi 0, %s24
      %s27 = sphi 0, %s25
      %s39 = sphi 0, %s41
      %s42 = sphi 0, %s39
      %s43 = sphi 0, %s42
      %s59 = sphi 0, %s43
      %s65 = sphi 0, %s67
      %s68 = sphi 0, %s65
      %s69 = sphi 0, %s68
      %s85 = sphi 0, %s69
      %s89 = sphi 0, %s89
      %s91 = sphi 0, %s89
      %s92 = sphi 0, %s91
      %s106 = sphi 0, %s92
      %s110 = sphi 0, %s110
      %s112 = sphi 0, %s110
      %s113 = sphi 0, %s112
      %s127 = sphi 0, %s113
      %s131 = sphi 0, %s131
      %s133 = sphi 0, %s131
      %s134 = sphi 0, %s133
      %s148 = sphi 0, %s134
      %s152 = sphi 0, %s152
      %s154 = sphi 0, %s152
      %s155 = sphi 0, %s154
      %s169 = sphi 0, %s155
      %s177 = sphi 0, %s179
      %s180 = sphi 0, %s177
      %s181 = sphi 0, %s180
      %s197 = sphi 0, %s181
      %s203 = sphi 0, %s205
      %s206 = sphi 0, %s203
      %s207 = sphi 0, %s206
      %s223 = sphi 0, %s207
    $region4: #{markov_model_rollout.1} parent=1 // loop_header_branch
      %18 = sbr.rel (%p16) target = $region8
    $region5: #{markov_model_rollout.1} parent=1 // loop_body
      %s20 = ssub.s32 %s15, 1
      %s21 = ssub.s32 %s15, 2
      %s28 = sadd.s32 1, %s23
      %p29 = scmp.ge.s32.totalorder %s28, 16
      %s30 = scalar_select %p29, 0, %s28
      %s31 = sadd.s32 1, %s22
      %s32 = scalar_select %p29, %s31, %s22
      %p33 = scmp.ge.s32.totalorder %s32, 1
      %s34 = scalar_select %p33, 0, %s32
      %s35 = ssub.s32 %s23, %s30
      %s36 = ssub.s32 %s22, %s34
      %s37 = sor.u32 %s35, %s36
      %p38 = scmp.eq.s32.totalorder %s37, 0
      %s40 = sadd.s32 %s39, 1
      %s41 = scalar_select %p38, %s39, %s40
      %p44 = pneg %p38
      %p45 = scmp.eq.s32.totalorder %s15, 15
      %p46 = por %p44, %p45
      %p47 = scmp.ne.s32.totalorder %s39, %s42
      %p48 = scmp.eq.s32.totalorder %s15, 0
      %p49 = por %p47, %p48
      %p50 = scmp.ne.s32.totalorder %s39, %s42
      %p51 = scmp.eq.s32.totalorder %s20, 15
      %p52 = por %p50, %p51
      %p53 = scmp.ne.s32.totalorder %s42, %s43
      %p54 = scmp.eq.s32.totalorder %s20, 0
      %p55 = por %p53, %p54
      %p56 = scmp.ne.s32.totalorder %s42, %s43
      %p57 = scmp.eq.s32.totalorder %s21, 15
      %p58 = por %p56, %p57
      %p60 = scmp.ne.s32.totalorder %s43, %s59
      %p61 = scmp.eq.s32.totalorder %s21, 0
      %p62 = por %p60, %p61
      %s63 = ssub.s32 %s22, %s34
      %p64 = scmp.eq.s32.totalorder %s63, 0
      %s66 = sadd.s32 %s65, 1
      %s67 = scalar_select %p64, %s65, %s66
      %p70 = pneg %p64
      %p71 = scmp.eq.s32.totalorder %s15, 15
      %p72 = por %p70, %p71
      %p73 = scmp.ne.s32.totalorder %s65, %s68
      %p74 = scmp.eq.s32.totalorder %s15, 0
      %p75 = por %p73, %p74
      %p76 = scmp.ne.s32.totalorder %s65, %s68
      %p77 = scmp.eq.s32.totalorder %s20, 15
      %p78 = por %p76, %p77
      %p79 = scmp.ne.s32.totalorder %s68, %s69
      %p80 = scmp.eq.s32.totalorder %s20, 0
      %p81 = por %p79, %p80
      %p82 = scmp.ne.s32.totalorder %s68, %s69
      %p83 = scmp.eq.s32.totalorder %s21, 15
      %p84 = por %p82, %p83
      %p86 = scmp.ne.s32.totalorder %s69, %s85
      %p87 = scmp.eq.s32.totalorder %s21, 0
      %p88 = por %p86, %p87
      %s90 = sadd.s32 %s89, 1
      %p93 = scmp.eq.s32.totalorder %s15, 15
      %p94 = scmp.ne.s32.totalorder %s89, %s91
      %p95 = scmp.eq.s32.totalorder %s15, 0
      %p96 = por %p94, %p95
      %p97 = scmp.ne.s32.totalorder %s89, %s91
      %p98 = scmp.eq.s32.totalorder %s20, 15
      %p99 = por %p97, %p98
      %p100 = scmp.ne.s32.totalorder %s91, %s92
      %p101 = scmp.eq.s32.totalorder %s20, 0
      %p102 = por %p100, %p101
      %p103 = scmp.ne.s32.totalorder %s91, %s92
      %p104 = scmp.eq.s32.totalorder %s21, 15
      %p105 = por %p103, %p104
      %p107 = scmp.ne.s32.totalorder %s92, %s106
      %p108 = scmp.eq.s32.totalorder %s21, 0
      %p109 = por %p107, %p108
      %s111 = sadd.s32 %s110, 1
      %p114 = scmp.eq.s32.totalorder %s15, 15
      %p115 = scmp.ne.s32.totalorder %s110, %s112
      %p116 = scmp.eq.s32.totalorder %s15, 0
      %p117 = por %p115, %p116
      %p118 = scmp.ne.s32.totalorder %s110, %s112
      %p119 = scmp.eq.s32.totalorder %s20, 15
      %p120 = por %p118, %p119
      %p121 = scmp.ne.s32.totalorder %s112, %s113
      %p122 = scmp.eq.s32.totalorder %s20, 0
      %p123 = por %p121, %p122
      %p124 = scmp.ne.s32.totalorder %s112, %s113
      %p125 = scmp.eq.s32.totalorder %s21, 15
      %p126 = por %p124, %p125
      %p128 = scmp.ne.s32.totalorder %s113, %s127
      %p129 = scmp.eq.s32.totalorder %s21, 0
      %p130 = por %p128, %p129
      %s132 = sadd.s32 %s131, 1
      %p135 = scmp.eq.s32.totalorder %s15, 15
      %p136 = scmp.ne.s32.totalorder %s131, %s133
      %p137 = scmp.eq.s32.totalorder %s15, 0
      %p138 = por %p136, %p137
      %p139 = scmp.ne.s32.totalorder %s131, %s133
      %p140 = scmp.eq.s32.totalorder %s20, 15
      %p141 = por %p139, %p140
      %p142 = scmp.ne.s32.totalorder %s133, %s134
      %p143 = scmp.eq.s32.totalorder %s20, 0
      %p144 = por %p142, %p143
      %p145 = scmp.ne.s32.totalorder %s133, %s134
      %p146 = scmp.eq.s32.totalorder %s21, 15
      %p147 = por %p145, %p146
      %p149 = scmp.ne.s32.totalorder %s134, %s148
      %p150 = scmp.eq.s32.totalorder %s21, 0
      %p151 = por %p149, %p150
      %s153 = sadd.s32 %s152, 1
      %p156 = scmp.eq.s32.totalorder %s15, 15
      %p157 = scmp.ne.s32.totalorder %s152, %s154
      %p158 = scmp.eq.s32.totalorder %s15, 0
      %p159 = por %p157, %p158
      %p160 = scmp.ne.s32.totalorder %s152, %s154
      %p161 = scmp.eq.s32.totalorder %s20, 15
      %p162 = por %p160, %p161
      %p163 = scmp.ne.s32.totalorder %s154, %s155
      %p164 = scmp.eq.s32.totalorder %s20, 0
      %p165 = por %p163, %p164
      %p166 = scmp.ne.s32.totalorder %s154, %s155
      %p167 = scmp.eq.s32.totalorder %s21, 15
      %p168 = por %p166, %p167
      %p170 = scmp.ne.s32.totalorder %s155, %s169
      %p171 = scmp.eq.s32.totalorder %s21, 0
      %p172 = por %p170, %p171
      %s173 = ssub.s32 %s23, %s30
      %s174 = ssub.s32 %s22, %s34
      %s175 = sor.u32 %s173, %s174
      %p176 = scmp.eq.s32.totalorder %s175, 0
      %s178 = sadd.s32 %s177, 1
      %s179 = scalar_select %p176, %s177, %s178
      %p182 = pneg %p176
      %p183 = scmp.eq.s32.totalorder %s15, 15
      %p184 = por %p182, %p183
      %p185 = scmp.ne.s32.totalorder %s177, %s180
      %p186 = scmp.eq.s32.totalorder %s15, 0
      %p187 = por %p185, %p186
      %p188 = scmp.ne.s32.totalorder %s177, %s180
      %p189 = scmp.eq.s32.totalorder %s20, 15
      %p190 = por %p188, %p189
      %p191 = scmp.ne.s32.totalorder %s180, %s181
      %p192 = scmp.eq.s32.totalorder %s20, 0
      %p193 = por %p191, %p192
      %p194 = scmp.ne.s32.totalorder %s180, %s181
      %p195 = scmp.eq.s32.totalorder %s21, 15
      %p196 = por %p194, %p195
      %p198 = scmp.ne.s32.totalorder %s181, %s197
      %p199 = scmp.eq.s32.totalorder %s21, 0
      %p200 = por %p198, %p199
      %s201 = ssub.s32 %s22, %s34
      %p202 = scmp.eq.s32.totalorder %s201, 0
      %s204 = sadd.s32 %s203, 1
      %s205 = scalar_select %p202, %s203, %s204
      %p208 = pneg %p202
      %p209 = scmp.eq.s32.totalorder %s15, 15
      %p210 = por %p208, %p209
      %p211 = scmp.ne.s32.totalorder %s203, %s206
      %p212 = scmp.eq.s32.totalorder %s15, 0
      %p213 = por %p211, %p212
      %p214 = scmp.ne.s32.totalorder %s203, %s206
      %p215 = scmp.eq.s32.totalorder %s20, 15
      %p216 = por %p214, %p215
      %p217 = scmp.ne.s32.totalorder %s206, %s207
      %p218 = scmp.eq.s32.totalorder %s20, 0
      %p219 = por %p217, %p218
      %p220 = scmp.ne.s32.totalorder %s206, %s207
      %p221 = scmp.eq.s32.totalorder %s21, 15
      %p222 = por %p220, %p221
      %p224 = scmp.ne.s32.totalorder %s207, %s223
      %p225 = scmp.eq.s32.totalorder %s21, 0
      %p226 = por %p224, %p225
      %p227 = scmp.le.s32.totalorder 1, %s15
      %p228 = scmp.lt.s32.totalorder %s15, 17
      %p229 = pnand %p227, %p228
      %p230 = pneg %p229
      // Predicated region
      $region9: #{markov_model_rollout.1} parent=5 // pred_check
        _
      $region10: #{markov_model_rollout.1} parent=5 // pred_check_branch
        %232 = sbr.rel (%p229) target = $region12
      $region11: #{markov_model_rollout.1} parent=5 // pred_region
        %s233 = ssub.s32 %s15, 1
        // Predicated region
        $region13: #{markov_model_rollout.1} parent=11 // pred_check
          %p234 = pneg %p81
        $region14: #{markov_model_rollout.1} parent=11 // pred_check_branch
          %236 = sbr.rel (%p234) target = $region16
        $region15: #{markov_model_rollout.1} parent=11 // pred_region
          %p237 = scmp.lt.s32.totalorder %s24, 0
          %s238 = scalar_select %p237, %s24, 0
          %s239 = smul.addr %s238, 8
          %s240 = scalar_lea.vmem %s1, %s239
        $region16: #{markov_model_rollout.1} parent=11 // pred_fallthru
          _
        // Predicated region
        $region17: #{markov_model_rollout.1} parent=11 // pred_check
          %p241 = pneg %p102
        $region18: #{markov_model_rollout.1} parent=11 // pred_check_branch
          %243 = sbr.rel (%p241) target = $region20
        $region19: #{markov_model_rollout.1} parent=11 // pred_region
          _
        $region20: #{markov_model_rollout.1} parent=11 // pred_fallthru
          _
        // Predicated region
        $region21: #{markov_model_rollout.1} parent=11 // pred_check
          %p244 = pneg %p123
        $region22: #{markov_model_rollout.1} parent=11 // pred_check_branch
          %246 = sbr.rel (%p244) target = $region24
        $region23: #{markov_model_rollout.1} parent=11 // pred_region
          _
        $region24: #{markov_model_rollout.1} parent=11 // pred_fallthru
          _
        // Predicated region
        $region25: #{markov_model_rollout.1} parent=11 // pred_check
          %p247 = pneg %p144
        $region26: #{markov_model_rollout.1} parent=11 // pred_check_branch
          %249 = sbr.rel (%p247) target = $region28
        $region27: #{markov_model_rollout.1} parent=11 // pred_region
          _
        $region28: #{markov_model_rollout.1} parent=11 // pred_fallthru
          _
        // Predicated region
        $region29: #{markov_model_rollout.1} parent=11 // pred_check
          %p250 = pneg %p165
        $region30: #{markov_model_rollout.1} parent=11 // pred_check_branch
          %252 = sbr.rel (%p250) target = $region32
        $region31: #{markov_model_rollout.1} parent=11 // pred_region
          _
        $region32: #{markov_model_rollout.1} parent=11 // pred_fallthru
          _
      $region12: #{markov_model_rollout.1} parent=5 // pred_fallthru
        _
      %p253 = scmp.lt.s32.totalorder %s15, 16
      // Predicated region
      $region33: #{markov_model_rollout.1} parent=5 // pred_check
        %p254 = pneg %p253
      $region34: #{markov_model_rollout.1} parent=5 // pred_check_branch
        %256 = sbr.rel (%p254) target = $region36
      $region35: #{markov_model_rollout.1} parent=5 // pred_region
        // Predicated region
        $region37: #{markov_model_rollout.1} parent=35 // pred_check
          %p257 = pneg %p49
        $region38: #{markov_model_rollout.1} parent=35 // pred_check_branch
          %259 = sbr.rel (%p257) target = $region40
        $region39: #{markov_model_rollout.1} parent=35 // pred_region
          %p260 = scmp.lt.s32.totalorder %s23, 15
          %s261 = scalar_select %p260, %s23, 15
          %p262 = scmp.lt.s32.totalorder %s22, 0
          %s263 = scalar_select %p262, %s22, 0
          %s264 = sadd.s32 %s263, %s261
          %s265 = smul.addr %s264, 8
          %s266 = scalar_lea.vmem %s0, %s265
        $region40: #{markov_model_rollout.1} parent=35 // pred_fallthru
          _
      $region36: #{markov_model_rollout.1} parent=5 // pred_fallthru
        _
      %p267 = scmp.le.s32.totalorder 1, %s15
      %p268 = scmp.lt.s32.totalorder %s15, 17
      %p269 = pnand %p267, %p268
      %p270 = pneg %p269
      // Predicated region
      $region41: #{markov_model_rollout.1} parent=5 // pred_check
        _
      $region42: #{markov_model_rollout.1} parent=5 // pred_check_branch
        %272 = sbr.rel (%p269) target = $region44
      $region43: #{markov_model_rollout.1} parent=5 // pred_region
        %s273 = ssub.s32 %s15, 1
        %p274 = scmp.lt.s32.totalorder %s25, 15
        %s275 = scalar_select %p274, %s25, 15
        %p276 = scmp.lt.s32.totalorder %s24, 0
        %s277 = scalar_select %p276, %s24, 0
        %s278 = sadd.s32 %s277, %s275
        %s279 = smul.addr %s278, 8
        %s280 = scalar_lea.vmem %s0, %s279
        %p281 = pneg %p55
        %p282 = pneg %p52
        %p283 = scmp.lt.s32.totalorder %s24, 0
        %s284 = scalar_select %p283, %s24, 0
        %s285 = smul.addr %s284, 8
        %s286 = scalar_lea.vmem %s1, %s285
        %p287 = pneg %p81
        %p288 = pneg %p78
        %p289 = pneg %p102
        %p290 = pneg %p99
        %p291 = pneg %p123
        %p292 = pneg %p120
        %p293 = pneg %p144
        %p294 = pneg %p141
        %p295 = pneg %p165
        %p296 = pneg %p162
        %p297 = pneg %p193
        %p298 = pneg %p190
        %p299 = scmp.lt.s32.totalorder %s25, 15
        %s300 = scalar_select %p299, %s25, 15
        %p301 = scmp.lt.s32.totalorder %s24, 0
        %s302 = scalar_select %p301, %s24, 0
        %s303 = sadd.s32 %s302, %s300
        %s304 = smul.addr %s303, 8
        %s305 = scalar_lea.vmem %s6, %s304
        %p306 = pneg %p219
        %p307 = pneg %p216
        %p308 = scmp.lt.s32.totalorder %s25, 15
        %s309 = scalar_select %p308, %s25, 15
        %p310 = scmp.lt.s32.totalorder %s24, 0
        %s311 = scalar_select %p310, %s24, 0
        %s312 = sadd.s32 %s311, %s309
        %s313 = smul.addr %s312, 8
        %s314 = scalar_lea.vmem %s0, %s313
        %p315 = scmp.lt.s32.totalorder %s24, 0
        %s316 = scalar_select %p315, %s24, 0
        %s317 = smul.addr %s316, 8
        %s318 = scalar_lea.vmem %s1, %s317
        %p319 = scmp.lt.s32.totalorder %s25, 15
        %s320 = scalar_select %p319, %s25, 15
        %p321 = scmp.lt.s32.totalorder %s24, 0
        %s322 = scalar_select %p321, %s24, 0
        %s323 = sadd.s32 %s322, %s320
        %s324 = smul.addr %s323, 8
        %s325 = scalar_lea.vmem %s6, %s324
        %p326 = scmp.eq.s32.totalorder %s25, 0
        // Predicated region
        $region45: #{markov_model_rollout.1} parent=43 // pred_check
          %p327 = pneg %p326
        $region46: #{markov_model_rollout.1} parent=43 // pred_check_branch
          %329 = sbr.rel (%p327) target = $region48
        $region47: #{markov_model_rollout.1} parent=43 // pred_region
          %v330 = vld [vmem:[%s318] sm:$0xff]
          %331 = vst [vmem:[#allocation2] sm:$0xff] %v330
        $region48: #{markov_model_rollout.1} parent=43 // pred_fallthru
          _
        %v332 = vld [vmem:[#allocation2] sm:$0xff]
        %v333 = vld [vmem:[%s314] sm:$0xff]
        %v334 = vadd.f32 %v332, %v333
        %v335 = vld [vmem:[%s2] sm:$0xff]
        %v336 = vld [vmem:[%s2 + $0x8] sm:$0xff]
        %v337 = vld [vmem:[%s2 + $0x10] sm:$0xff]
        %v338 = vld [vmem:[%s2 + $0x18] sm:$0xff]
        %v339 = vld [vmem:[%s2 + $0x20] sm:$0xff]
        %v340 = vld [vmem:[%s2 + $0x28] sm:$0xff]
        %v341 = vld [vmem:[%s2 + $0x30] sm:$0xff]
        %v342 = vld [vmem:[%s2 + $0x38] sm:$0xff]
        %v343 = vld [vmem:[%s2 + $0x40] sm:$0xff]
        %v344 = vld [vmem:[%s2 + $0x48] sm:$0xff]
        %v345 = vld [vmem:[%s2 + $0x50] sm:$0xff]
        %v346 = vld [vmem:[%s2 + $0x58] sm:$0xff]
        %v347 = vld [vmem:[%s2 + $0x60] sm:$0xff]
        %v348 = vld [vmem:[%s2 + $0x68] sm:$0xff]
        %v349 = vld [vmem:[%s2 + $0x70] sm:$0xff]
        %v350 = vld [vmem:[%s2 + $0x78] sm:$0xff]
        %v351 = vld [vmem:[%s3] sm:$0x1]
        %v353 = vlaneseq
        %v354 = vshrl.u32 %v353, 7
        %v355 = vsub.s32 0, %v354
        %v356 = vrot.slane %v351, %v355
        %358 = vmatprep.subr.mxu0 0.0
        %359 = vmatpush1.msra.mxu0 %v335
        %360 = vmatprep.subr.mxu0 0.0
        %361 = vmatpush1.msra.mxu0 %v336
        %362 = vmatprep.subr.mxu0 0.0
        %363 = vmatpush1.msra.mxu0 %v337
        %364 = vmatprep.subr.mxu0 0.0
        %365 = vmatpush1.msra.mxu0 %v338
        %366 = vmatprep.subr.mxu0 0.0
        %367 = vmatpush1.msra.mxu0 %v339
        %368 = vmatprep.subr.mxu0 0.0
        %369 = vmatpush1.msra.mxu0 %v340
        %370 = vmatprep.subr.mxu0 0.0
        %371 = vmatpush1.msra.mxu0 %v341
        %372 = vmatprep.subr.mxu0 0.0
        %373 = vmatpush1.msra.mxu0 %v342
        %374 = vmatprep.subr.mxu0 0.0
        %375 = vmatpush1.msra.mxu0 %v343
        %376 = vmatprep.subr.mxu0 0.0
        %377 = vmatpush1.msra.mxu0 %v344
        %378 = vmatprep.subr.mxu0 0.0
        %379 = vmatpush1.msra.mxu0 %v345
        %380 = vmatprep.subr.mxu0 0.0
        %381 = vmatpush1.msra.mxu0 %v346
        %382 = vmatprep.subr.mxu0 0.0
        %383 = vmatpush1.msra.mxu0 %v347
        %384 = vmatprep.subr.mxu0 0.0
        %385 = vmatpush1.msra.mxu0 %v348
        %386 = vmatprep.subr.mxu0 0.0
        %387 = vmatpush1.msra.mxu0 %v349
        %388 = vmatprep.subr.mxu0 0.0
        %389 = vmatpush1.msra.mxu0 %v350
        %390 = vmatprep.subr.mxu0 0.0
        %391 = vmatpush1.msra.mxu0 0.0
        %392 = vmatprep.subr.mxu0 0.0
        %393 = vmatpush1.msra.mxu0 0.0
        %394 = vmatprep.subr.mxu0 0.0
        %395 = vmatpush1.msra.mxu0 0.0
        %396 = vmatprep.subr.mxu0 0.0
        %397 = vmatpush1.msra.mxu0 0.0
        %398 = vmatprep.subr.mxu0 0.0
        %399 = vmatpush1.msra.mxu0 0.0
        %400 = vmatprep.subr.mxu0 0.0
        %401 = vmatpush1.msra.mxu0 0.0
        %402 = vmatprep.subr.mxu0 0.0
        %403 = vmatpush1.msra.mxu0 0.0
        %404 = vmatprep.subr.mxu0 0.0
        %405 = vmatpush1.msra.mxu0 0.0
        %406 = vmatprep.subr.mxu0 0.0
        %407 = vmatpush1.msra.mxu0 0.0
        %408 = vmatprep.subr.mxu0 0.0
        %409 = vmatpush1.msra.mxu0 0.0
        %410 = vmatprep.subr.mxu0 0.0
        %411 = vmatpush1.msra.mxu0 0.0
        %412 = vmatprep.subr.mxu0 0.0
        %413 = vmatpush1.msra.mxu0 0.0
        %414 = vmatprep.subr.mxu0 0.0
        %415 = vmatpush1.msra.mxu0 0.0
        %416 = vmatprep.subr.mxu0 0.0
        %417 = vmatpush1.msra.mxu0 0.0
        %418 = vmatprep.subr.mxu0 0.0
        %419 = vmatpush1.msra.mxu0 0.0
        %420 = vmatprep.subr.mxu0 0.0
        %421 = vmatpush1.msra.mxu0 0.0
        %422 = vmatprep.mubr.f32.mxu0 0.0
        %423 = vmatmul.mubr.f32.gmra.mrb[0].mxu0 %v334
        %v424 = vpop.f32.mrb[0].mxu0
        %v425 = vadd.f32 %v356, %v424
        %v426 = vpop.f32.mrb[0].mxu0
        %427 = vdwg.mxu0
        %v428 = vtanh.pop %v425
        %429 = vst [vmem:[#allocation2] sm:$0xff] %v428
        %v430 = vld [vmem:[%s4] sm:$0xff]
        %v431 = vld [vmem:[%s4 + $0x8] sm:$0xff]
        %v432 = vld [vmem:[%s4 + $0x10] sm:$0xff]
        %v433 = vld [vmem:[%s4 + $0x18] sm:$0xff]
        %v434 = vld [vmem:[%s4 + $0x20] sm:$0xff]
        %v435 = vld [vmem:[%s4 + $0x28] sm:$0xff]
        %v436 = vld [vmem:[%s4 + $0x30] sm:$0xff]
        %v437 = vld [vmem:[%s4 + $0x38] sm:$0xff]
        %v438 = vld [vmem:[%s4 + $0x40] sm:$0xff]
        %v439 = vld [vmem:[%s4 + $0x48] sm:$0xff]
        %v440 = vld [vmem:[%s4 + $0x50] sm:$0xff]
        %v441 = vld [vmem:[%s4 + $0x58] sm:$0xff]
        %v442 = vld [vmem:[%s4 + $0x60] sm:$0xff]
        %v443 = vld [vmem:[%s4 + $0x68] sm:$0xff]
        %v444 = vld [vmem:[%s4 + $0x70] sm:$0xff]
        %v445 = vld [vmem:[%s4 + $0x78] sm:$0xff]
        %v446 = vld [vmem:[%s5] sm:$0x1]
        %v448 = vlaneseq
        %v449 = vshrl.u32 %v448, 7
        %v450 = vsub.s32 0, %v449
        %v451 = vrot.slane %v446, %v450
        %453 = vmatprep.subr.mxu0 0.0
        %454 = vmatpush1.msra.mxu0 %v430
        %455 = vmatprep.subr.mxu0 0.0
        %456 = vmatpush1.msra.mxu0 %v431
        %457 = vmatprep.subr.mxu0 0.0
        %458 = vmatpush1.msra.mxu0 %v432
        %459 = vmatprep.subr.mxu0 0.0
        %460 = vmatpush1.msra.mxu0 %v433
        %461 = vmatprep.subr.mxu0 0.0
        %462 = vmatpush1.msra.mxu0 %v434
        %463 = vmatprep.subr.mxu0 0.0
        %464 = vmatpush1.msra.mxu0 %v435
        %465 = vmatprep.subr.mxu0 0.0
        %466 = vmatpush1.msra.mxu0 %v436
        %467 = vmatprep.subr.mxu0 0.0
        %468 = vmatpush1.msra.mxu0 %v437
        %469 = vmatprep.subr.mxu0 0.0
        %470 = vmatpush1.msra.mxu0 %v438
        %471 = vmatprep.subr.mxu0 0.0
        %472 = vmatpush1.msra.mxu0 %v439
        %473 = vmatprep.subr.mxu0 0.0
        %474 = vmatpush1.msra.mxu0 %v440
        %475 = vmatprep.subr.mxu0 0.0
        %476 = vmatpush1.msra.mxu0 %v441
        %477 = vmatprep.subr.mxu0 0.0
        %478 = vmatpush1.msra.mxu0 %v442
        %479 = vmatprep.subr.mxu0 0.0
        %480 = vmatpush1.msra.mxu0 %v443
        %481 = vmatprep.subr.mxu0 0.0
        %482 = vmatpush1.msra.mxu0 %v444
        %483 = vmatprep.subr.mxu0 0.0
        %484 = vmatpush1.msra.mxu0 %v445
        %485 = vmatprep.subr.mxu0 0.0
        %486 = vmatpush1.msra.mxu0 0.0
        %487 = vmatprep.subr.mxu0 0.0
        %488 = vmatpush1.msra.mxu0 0.0
        %489 = vmatprep.subr.mxu0 0.0
        %490 = vmatpush1.msra.mxu0 0.0
        %491 = vmatprep.subr.mxu0 0.0
        %492 = vmatpush1.msra.mxu0 0.0
        %493 = vmatprep.subr.mxu0 0.0
        %494 = vmatpush1.msra.mxu0 0.0
        %495 = vmatprep.subr.mxu0 0.0
        %496 = vmatpush1.msra.mxu0 0.0
        %497 = vmatprep.subr.mxu0 0.0
        %498 = vmatpush1.msra.mxu0 0.0
        %499 = vmatprep.subr.mxu0 0.0
        %500 = vmatpush1.msra.mxu0 0.0
        %501 = vmatprep.subr.mxu0 0.0
        %502 = vmatpush1.msra.mxu0 0.0
        %503 = vmatprep.subr.mxu0 0.0
        %504 = vmatpush1.msra.mxu0 0.0
        %505 = vmatprep.subr.mxu0 0.0
        %506 = vmatpush1.msra.mxu0 0.0
        %507 = vmatprep.subr.mxu0 0.0
        %508 = vmatpush1.msra.mxu0 0.0
        %509 = vmatprep.subr.mxu0 0.0
        %510 = vmatpush1.msra.mxu0 0.0
        %511 = vmatprep.subr.mxu0 0.0
        %512 = vmatpush1.msra.mxu0 0.0
        %513 = vmatprep.subr.mxu0 0.0
        %514 = vmatpush1.msra.mxu0 0.0
        %515 = vmatprep.subr.mxu0 0.0
        %516 = vmatpush1.msra.mxu0 0.0
        %517 = vmatprep.mubr.f32.mxu0 0.0
        %518 = vmatmul.mubr.f32.gmra.mrb[0].mxu0 %v428
        %v519 = vpop.f32.mrb[0].mxu0
        %v520 = vadd.f32 %v451, %v519
        %v521 = vpop.f32.mrb[0].mxu0
        %522 = vdwg.mxu0
        %523 = vmax.xlane.f32.xlu0 %v520
        %v524 = vpop.xlane.xlu0 %523
        %v525 = vsub.f32 %v520, %v524
        %v526 = vmul.f32 %v525, 1.442695
        %v527 = vpow.pop %v526
        %528 = vadd.xlane.f32.xlu0 %v527
        %v529 = vpop.xlane.xlu0 %528
        %v530 = vrcp.pop %v529
        %v531 = vmul.f32 %v527, %v530
        %532 = vst [vmem:[%s325] sm:$0xff] %v531
        %533 = vst [vmem:[#allocation3] sm:$0xff] %v428
        %p534 = scmp.lt.s32.totalorder %s25, 15
        %s535 = scalar_select %p534, %s25, 15
        %p536 = scmp.lt.s32.totalorder %s24, 0
        %s537 = scalar_select %p536, %s24, 0
        %s538 = sadd.s32 %s537, %s535
        %s539 = smul.addr %s538, 8
        %s540 = scalar_lea.vmem %s6, %s539
        // Predicated region
        $region49: #{markov_model_rollout.1} parent=43 // pred_check
          %p541 = pneg %p190
        $region50: #{markov_model_rollout.1} parent=43 // pred_check_branch
          %543 = sbr.rel (%p541) target = $region52
        $region51: #{markov_model_rollout.1} parent=43 // pred_region
          _
        $region52: #{markov_model_rollout.1} parent=43 // pred_fallthru
          _
        // Predicated region
        $region53: #{markov_model_rollout.1} parent=43 // pred_check
          %p544 = pneg %p216
        $region54: #{markov_model_rollout.1} parent=43 // pred_check_branch
          %546 = sbr.rel (%p544) target = $region56
        $region55: #{markov_model_rollout.1} parent=43 // pred_region
          %s548 = ssub.s32 128, 128
          %549 = vsyncadd [#allocation4], %s548
          %s550 = smul.addr %s24, 128
          %s551 = scalar_lea.hbm %s7, %s550
          %s553 = sshll.u32 [#allocation3], 4
          %s554 = int_to_ptr.vmem [resolvable:$true] %s553
          %556 = dma.vmem_to_hbm [thread:$0]  %s554, 128, %s551, [#allocation4]
        $region56: #{markov_model_rollout.1} parent=43 // pred_fallthru
          _
        // Predicated region
        $region57: #{markov_model_rollout.1} parent=43 // pred_check
          %p557 = pneg %p216
        $region58: #{markov_model_rollout.1} parent=43 // pred_check_branch
          %559 = sbr.rel (%p557) target = $region60
        $region59: #{markov_model_rollout.1} parent=43 // pred_region
          %560 = dma.done [#allocation4], 128
        $region60: #{markov_model_rollout.1} parent=43 // pred_fallthru
          _
      $region44: #{markov_model_rollout.1} parent=5 // pred_fallthru
        _
      %p561 = scmp.le.s32.totalorder 2, %s15
      // Predicated region
      $region61: #{markov_model_rollout.1} parent=5 // pred_check
        %p562 = pneg %p561
      $region62: #{markov_model_rollout.1} parent=5 // pred_check_branch
        %564 = sbr.rel (%p562) target = $region64
      $region63: #{markov_model_rollout.1} parent=5 // pred_region
        %s565 = ssub.s32 %s15, 2
        // Predicated region
        $region65: #{markov_model_rollout.1} parent=63 // pred_check
          %p566 = pneg %p196
        $region66: #{markov_model_rollout.1} parent=63 // pred_check_branch
          %568 = sbr.rel (%p566) target = $region68
        $region67: #{markov_model_rollout.1} parent=63 // pred_region
          %p569 = scmp.lt.s32.totalorder %s27, 15
          %s570 = scalar_select %p569, %s27, 15
          %p571 = scmp.lt.s32.totalorder %s26, 0
          %s572 = scalar_select %p571, %s26, 0
          %s573 = sadd.s32 %s572, %s570
          %s574 = smul.addr %s573, 8
          %s575 = scalar_lea.vmem %s6, %s574
        $region68: #{markov_model_rollout.1} parent=63 // pred_fallthru
          _
      $region64: #{markov_model_rollout.1} parent=5 // pred_fallthru
        _
    $region6: #{markov_model_rollout.1} parent=1 // loop_footer
      %s19 = sadd.s32 1, %s15
    $region7: #{markov_model_rollout.1} parent=1 // loop_footer_branch
      %14 = sbr.rel target = $region3
    $region8: #{markov_model_rollout.1} parent=1 // loop_exit
      _
    %576 = vsyncpa [#allocation4], 1
    %s577 = scalar_lea.sflag [#allocation4], 1
    %578 = vsyncpa %s577, 1

</llo_original>
